<compile_context>
chip_gen: v5e
topology: v5e:2x2
jax: 0.10.0
libtpu: 0.0.40
codegen_flags: <defaults>
</compile_context>

<pallas_src>
import jax
import jax.numpy as jnp
from jax import lax
from jax.experimental import pallas as pl
from jax.experimental.pallas import tpu as pltpu


def _linear_kernel(x_ref, w_ref, b_ref, o_ref):
    # x_ref: (tile_b, C)   w_ref: (3, C) native nn.Linear layout
    # b_ref: (1, 3)        o_ref: (tile_b, 3)
    # Contract C with C (x @ W.T) on the MXU, accumulating in f32.
    acc = lax.dot_general(
        x_ref[...],
        w_ref[...],
        dimension_numbers=(((1,), (1,)), ((), ())),
        preferred_element_type=jnp.float32,
    )
    o_ref[...] = (acc + b_ref[...]).astype(o_ref.dtype)


def _round_up(v, m):
    return ((v + m - 1) // m) * m


def _vmem_capacity_bytes():
    """Physical VMEM of the current generation (64 MiB v7x, 128 MiB v5e/v6e)."""
    try:
        cap = int(pltpu.get_tpu_info().vmem_capacity_bytes)
        if cap > 0:
            return cap
    except Exception:  # off-TPU / older jax: assume the smallest part (v7x).
        pass
    return 64 * 1024 * 1024


def _choose_tile_b(B, C, itemsize, vmem_cap):
    """Pick the batch tile: the biggest step the VMEM budget allows, but >= 4
    grid steps whenever the problem is large enough that megacore sharding and
    DMA/compute overlap matter."""
    c_pad = _round_up(max(C, 1), 128)
    row_bytes = c_pad * itemsize
    # x is double-buffered by the pipeline: give each buffer ~1/4 of VMEM and
    # leave the rest for the resident weight/bias, output tile and margin.
    per_buf_budget = max(4 << 20, vmem_cap // 4)
    rows_fit = max(8, (per_buf_budget // row_bytes) // 8 * 8)

    if B * row_bytes <= (2 << 20):
        # Tiny problem (few us total): one block. Splitting only adds the
        # ~0.35 us/step pipeline overhead.
        return B

    # Aim for >= 4 grid steps (work for both v7x TensorCores + overlap),
    # subject to the per-buffer VMEM budget. Tiles < B must be multiples of 8.
    quarter = _round_up(pl.cdiv(B, 4), 8)
    tile = max(8, min(rows_fit, quarter))
    return B if tile >= B else tile


def _vmem_limit_bytes(tile_b, C, itemsize, vmem_cap):
    """Scoped-VMEM request from the actual (lane/sublane padded) buffer plan."""
    c_pad = _round_up(max(C, 1), 128)
    tb_pad = _round_up(max(tile_b, 1), 8)
    x_b = 2 * tb_pad * c_pad * itemsize      # x tile, double-buffered
    w_b = 2 * 8 * c_pad * itemsize           # (3, C) weight -> (8, c_pad) tile
    bias_b = 2 * 8 * 128 * 4                 # (1, 3) bias -> (8, 128) f32
    o_b = 2 * tb_pad * 128 * 4               # (tile_b, 3) out -> (tb, 128) f32
    need = x_b + w_b + bias_b + o_b
    limit = int(need * 1.5) + (2 << 20)      # headroom for Mosaic scratch
    ceiling = int(vmem_cap * 0.85)
    return max(min(limit, ceiling), 4 << 20)


def translation_predictor(x, weight, bias, *, tile_b=None, out_dtype=None):
    """Pallas implementation of TranslationPredictor.forward: y = x @ W.T + b.

    x is consumed in its own dtype (the wrapper deliberately never casts it):
    pass bf16 activations from the producer to halve the HBM read that
    dominates this memory-bound op. The MXU accumulates in f32 regardless.

    Args:
      x:      (B, C)
      weight: (3, C)  — native PyTorch nn.Linear layout (not transposed)
      bias:   (3,)
      tile_b: optional batch-tile override; must be a multiple of 8 if < B.
      out_dtype: output dtype; defaults to x.dtype.
    Returns:
      (B, 3) array of out_dtype.
    """
    B, C = x.shape
    out_f, wc = weight.shape
    if wc != C:
        raise ValueError(f"weight shape {weight.shape} does not match x {x.shape}")
    if out_dtype is None:
        out_dtype = x.dtype

    # Only the tiny (3, C) weight and (3,) bias are cast / reshaped here.
    w = weight.astype(x.dtype)
    b2d = bias.reshape(1, out_f).astype(jnp.float32)

    itemsize = jnp.dtype(x.dtype).itemsize
    vmem_cap = _vmem_capacity_bytes()
    if tile_b is None:
        tile_b = _choose_tile_b(B, C, itemsize, vmem_cap)
    else:
        tile_b = min(int(tile_b), B)
        if tile_b < B and tile_b % 8 != 0:
            raise ValueError(
                f"tile_b={tile_b} must be a multiple of 8 when smaller than "
                f"B={B} (TPU (8,128) BlockSpec constraint)")
        tile_b = max(tile_b, 1)

    grid = (pl.cdiv(B, tile_b),)

    out = pl.pallas_call(
        _linear_kernel,
        out_shape=jax.ShapeDtypeStruct((B, out_f), out_dtype),
        grid_spec=pltpu.PrefetchScalarGridSpec(
            num_scalar_prefetch=0,
            grid=grid,
            in_specs=[
                # x: tiled along batch -> pipelined, double-buffered HBM->VMEM DMA.
                pl.BlockSpec((tile_b, C), lambda i: (i, 0)),
                # weight / bias: constant block index -> stay resident in VMEM
                # (native (3, C) layout keeps the padded tile tiny: (8, C_pad)).
                pl.BlockSpec((out_f, C), lambda i: (0, 0)),
                pl.BlockSpec((1, out_f), lambda i: (0, 0)),
            ],
            out_specs=pl.BlockSpec((tile_b, out_f), lambda i: (i, 0)),
        ),
        compiler_params=pltpu.CompilerParams(
            # Independent row blocks: shard across both TensorCores on v7x.
            dimension_semantics=("parallel",),
            vmem_limit_bytes=_vmem_limit_bytes(tile_b, C, itemsize, vmem_cap),
        ),
    )(x, w, b2d)
    return out


if __name__ == "__main__":
    key = jax.random.PRNGKey(0)
    kx, kw, kb = jax.random.split(key, 3)

    # --- Test 1: small shapes consistent with the module, f32 path ----------
    B, IN_CHANNELS = 8, 32
    x = jax.random.normal(kx, (B, IN_CHANNELS), dtype=jnp.float32)
    weight = jax.random.normal(kw, (3, IN_CHANNELS), dtype=jnp.float32) * 0.1
    bias = jax.random.normal(kb, (3,), dtype=jnp.float32) * 0.1

    y = jax.block_until_ready(translation_predictor(x, weight, bias))
    y_ref = x @ weight.T + bias
    assert y.shape == (B, 3) and y.dtype == jnp.float32
    assert jnp.allclose(y, y_ref, atol=1e-5, rtol=1e-5)

    # --- Test 2: ragged multi-block tiling (B not a multiple of tile_b) -----
    B2 = 20
    x2 = jax.random.normal(kx, (B2, IN_CHANNELS), dtype=jnp.float32)
    y2 = jax.block_until_ready(translation_predictor(x2, weight, bias, tile_b=8))
    y2_ref = x2 @ weight.T + bias
    assert y2.shape == (B2, 3)
    assert jnp.allclose(y2, y2_ref, atol=1e-5, rtol=1e-5)

    # --- Test 3: bf16 activations from "upstream" (no wrapper cast of x) ----
    B3, C3 = 64, 128
    x3 = (jax.random.normal(kx, (B3, C3), dtype=jnp.float32) * 0.5
          ).astype(jnp.bfloat16)
    w3 = jax.random.normal(kw, (3, C3), dtype=jnp.float32) * 0.1
    b3 = jax.random.normal(kb, (3,), dtype=jnp.float32) * 0.1
    y3 = jax.block_until_ready(
        translation_predictor(x3, w3, b3, out_dtype=jnp.float32))
    y3_ref = x3.astype(jnp.float32) @ w3.T + b3
    assert y3.shape == (B3, 3)
    assert jnp.allclose(y3, y3_ref, atol=4e-2, rtol=4e-2)

    # --- Test 4: auto-tiled multi-block path (grid > 1, both TCs on v7x) ----
    B4, C4 = 4096, 256
    x4 = jax.random.normal(kx, (B4, C4), dtype=jnp.float32) * 0.1
    w4 = jax.random.normal(kw, (3, C4), dtype=jnp.float32) * 0.1
    b4 = jax.random.normal(kb, (3,), dtype=jnp.float32) * 0.1
    y4 = jax.block_until_ready(translation_predictor(x4, w4, b4))
    y4_ref = x4 @ w4.T + b4
    assert y4.shape == (B4, 3)
    assert jnp.allclose(y4, y4_ref, atol=1e-3, rtol=1e-3)

    print("KERNEL_OK")
</pallas_src>

<mosaic_0001>
module attributes {stable_mosaic.version = 11 : i64} {
  func.func @_linear_kernel(%arg0: i32, %arg1: memref<8x32xf32, #tpu.memory_space<vmem>>, %arg2: memref<3x32xf32, #tpu.memory_space<vmem>>, %arg3: memref<1x3xf32, #tpu.memory_space<vmem>>, %arg4: memref<8x3xf32, #tpu.memory_space<vmem>>) attributes {dimension_semantics = [#tpu.dimension_semantics<parallel>], iteration_bounds = array<i64: 1>, scalar_prefetch = 0 : i64, scratch_operands = 0 : i64, tpu.core_type = #tpu.core_type<tc>, window_params = [{transform_indices = @transform_0, window_bounds = array<i64: 8, 32>}, {pipeline_mode = #tpu.pipeline_mode<synchronous>, transform_indices = @transform_1, window_bounds = array<i64: 3, 32>}, {pipeline_mode = #tpu.pipeline_mode<synchronous>, transform_indices = @transform_2, window_bounds = array<i64: 1, 3>}, {transform_indices = @transform_3, window_bounds = array<i64: 8, 3>}]} {
    %c0 = arith.constant 0 : index
    %c0_0 = arith.constant 0 : index
    %0 = vector.load %arg1[%c0, %c0_0] : memref<8x32xf32, #tpu.memory_space<vmem>>, vector<8x32xf32>
    %c0_1 = arith.constant 0 : index
    %c0_2 = arith.constant 0 : index
    %1 = vector.load %arg2[%c0_1, %c0_2] : memref<3x32xf32, #tpu.memory_space<vmem>>, vector<3x32xf32>
    %cst = arith.constant dense<0.000000e+00> : vector<8x3xf32>
    %2 = tpu.matmul %0, %1, %cst {dimension_numbers = #tpu.dot_dimension_numbers<[1], [1], [0], [0], [0, 0, 1, 0], [], []>} : vector<8x32xf32>, vector<3x32xf32>, vector<8x3xf32> -> vector<8x3xf32>
    %c0_3 = arith.constant 0 : index
    %c0_4 = arith.constant 0 : index
    %3 = vector.load %arg3[%c0_3, %c0_4] : memref<1x3xf32, #tpu.memory_space<vmem>>, vector<1x3xf32>
    %4 = vector.broadcast %3 : vector<1x3xf32> to vector<8x3xf32>
    %5 = arith.addf %2, %4 : vector<8x3xf32>
    %c0_5 = arith.constant 0 : index
    %c0_6 = arith.constant 0 : index
    %6 = vector.load %arg4[%c0_5, %c0_6] : memref<8x3xf32, #tpu.memory_space<vmem>>, vector<8x3xf32>
    tpu.vector_store %arg4[%c0_5, %c0_6], %5 {strides = array<i32>} : memref<8x3xf32, #tpu.memory_space<vmem>>, vector<8x3xf32>,
    return
  }
  func.func @transform_0(%arg0: i32) -> (i32, i32) {
    %c0_i32 = arith.constant 0 : i32
    %c0_i32_0 = arith.constant 0 : i32
    return %arg0, %c0_i32 : i32, i32
  }
  func.func @transform_1(%arg0: i32) -> (i32, i32) {
    %c0_i32 = arith.constant 0 : i32
    %c0_i32_0 = arith.constant 0 : i32
    %c0_i32_1 = arith.constant 0 : i32
    return %c0_i32, %c0_i32_0 : i32, i32
  }
  func.func @transform_2(%arg0: i32) -> (i32, i32) {
    %c0_i32 = arith.constant 0 : i32
    %c0_i32_0 = arith.constant 0 : i32
    %c0_i32_1 = arith.constant 0 : i32
    return %c0_i32, %c0_i32_0 : i32, i32
  }
  func.func @transform_3(%arg0: i32) -> (i32, i32) {
    %c0_i32 = arith.constant 0 : i32
    %c0_i32_0 = arith.constant 0 : i32
    return %arg0, %c0_i32 : i32, i32
  }
}

</mosaic_0001>

<llo_original>
// kernel: tpu_custom_call.1
$region0: #{tpu_custom_call.1}
  #allocation0 [shape = 'u32[]', space=smem, size = 0x4, offset = 0x4, fixed_abs, tag = 'smem constant byte address 0x4 - core index']
  #allocation1 [shape = 'u32[72,128]{1,0:T(1,128)}', space=vmem, size = 0x9000, scoped, tag = 'internal scratch']
  %s0 = inlined_call_operand.hbm [shape: f32[8,32], index: 0, kind: input, shape index: {}]
  %s1 = inlined_call_operand.hbm [shape: f32[3,32], index: 1, kind: input, shape index: {}]
  %s2 = inlined_call_operand.vmem [shape: f32[1,3], index: 2, kind: input, shape index: {}]
  %s3 = inlined_call_operand.vmem [shape: f32[8,3], index: 3, kind: output, shape index: {}]
  %s4 = sld [smem:[#allocation0]]
  $region30: #{tpu_custom_call.1} parent=0
    _
  %s6 = ssub.s32 1, %s4
  %s7 = scalar_select 0, %s6, %s4
  $region1: #{tpu_custom_call.1} parent=0
    #allocation2 [shape = 'u8[4096]{0}', space=vmem, size = 0x1000, scoped, tag = 'input window, operand 0, single buffered']
    #allocation3 [shape = 's32[1]{0}', space=sflag, size = 0x4, scoped, tag = 'scoped memory for tpu_custom_call.1']
    #allocation4 [shape = 'u8[2048]{0}', space=vmem, size = 0x800, scoped, tag = 'input window, operand 1, single buffered']
    #allocation5 [shape = 's32[1]{0}', space=sflag, size = 0x4, scoped, tag = 'scoped memory for tpu_custom_call.1']
    %8 = vsyncpa [#allocation3], 0
    %9 = vsyncpa [#allocation5], 0
    // Predicated region
    $region2: #{tpu_custom_call.1} parent=1 // pred_check
      _
    $region3: #{tpu_custom_call.1} parent=1 // pred_check_branch
      %11 = sbr.rel (0) target = $region5
    $region4: #{tpu_custom_call.1} parent=1 // pred_region
      %13 = vsyncadd [#allocation3], 0
      %s15 = sshll.u32 %s0, 4
      %s16 = int_to_ptr.hbm [resolvable:$true] %s15
      %s17 = sshll.u32 [#allocation2], 4
      %s18 = int_to_ptr.vmem [resolvable:$true] %s17
      %20 = dma.hbm_to_vmem [thread:$0]  %s16, 128, %s18, [#allocation3]
    $region5: #{tpu_custom_call.1} parent=1 // pred_fallthru
      _
    // Predicated region
    $region6: #{tpu_custom_call.1} parent=1 // pred_check
      _
    $region7: #{tpu_custom_call.1} parent=1 // pred_check_branch
      %22 = sbr.rel (0) target = $region9
    $region8: #{tpu_custom_call.1} parent=1 // pred_region
      %24 = vsyncadd [#allocation5], 0
      %s26 = sshll.u32 %s1, 4
      %s27 = int_to_ptr.hbm [resolvable:$true] %s26
      %s28 = sshll.u32 [#allocation4], 4
      %s29 = int_to_ptr.vmem [resolvable:$true] %s28
      %31 = dma.hbm_to_vmem [thread:$0]  %s27, 64, %s29, [#allocation5]
    $region9: #{tpu_custom_call.1} parent=1 // pred_fallthru
      _
    // Predicated region
    $region10: #{tpu_custom_call.1} parent=1 // pred_check
      _
    $region11: #{tpu_custom_call.1} parent=1 // pred_check_branch
      %33 = sbr.rel (0) target = $region13
    $region12: #{tpu_custom_call.1} parent=1 // pred_region
      _
    $region13: #{tpu_custom_call.1} parent=1 // pred_fallthru
      _
    // Predicated region
    $region14: #{tpu_custom_call.1} parent=1 // pred_check
      _
    $region15: #{tpu_custom_call.1} parent=1 // pred_check_branch
      %35 = sbr.rel (0) target = $region17
    $region16: #{tpu_custom_call.1} parent=1 // pred_region
      %37 = dma.done [#allocation3], 128
    $region17: #{tpu_custom_call.1} parent=1 // pred_fallthru
      _
    // Predicated region
    $region18: #{tpu_custom_call.1} parent=1 // pred_check
      _
    $region19: #{tpu_custom_call.1} parent=1 // pred_check_branch
      %39 = sbr.rel (0) target = $region21
    $region20: #{tpu_custom_call.1} parent=1 // pred_region
      %41 = dma.done [#allocation5], 64
    $region21: #{tpu_custom_call.1} parent=1 // pred_fallthru
      _
    %v42 = vld [vmem:[#allocation2] sm:$0xff]
    %v43 = vld [vmem:[#allocation4] sm:$0x7]
    %v44 = vld [vmem:[%s2] sm:$0x1]
    %v46 = vperm.slane %v44, 0
    %vm48 = vcmask 261120
    %v50 = vsel %vm48, %v42, 0
    %v53 = vsel %vm48, %v43, 0
    %55 = vmatpush.xpose.msra.mxu0 0.0
    %56 = vmatpush.xpose.msra.mxu0 0.0
    %57 = vmatpush.xpose.msra.mxu0 0.0
    %58 = vmatpush.xpose.msra.mxu0 0.0
    %59 = vmatpush.xpose.msra.mxu0 0.0
    %60 = vmatpush.xpose.msra.mxu0 0.0
    %61 = vmatpush.xpose.msra.mxu0 0.0
    %62 = vmatpush.xpose.msra.mxu0 0.0
    %63 = vmatpush.xpose.msra.mxu0 0.0
    %64 = vmatpush.xpose.msra.mxu0 0.0
    %65 = vmatpush.xpose.msra.mxu0 0.0
    %66 = vmatpush.xpose.msra.mxu0 0.0
    %67 = vmatpush.xpose.msra.mxu0 0.0
    %68 = vmatpush.xpose.msra.mxu0 0.0
    %69 = vmatpush.xpose.msra.mxu0 0.0
    %70 = vmatpush.xpose.msra.mxu0 %v53
    %71 = vmatmul.f32.gmra.mxu0 %v50
    %v72 = vpop.f32.mrf.mxu0
    %v73 = vadd.f32 %v46, %v72
    %74 = vdwg.mxu0
    %vm75 = vcmask 23552
    %76 = vst.msk [vmem:[%s3] sm:$0xff] %vm75, %v73
    // Predicated region
    $region22: #{tpu_custom_call.1} parent=1 // pred_check
      _
    $region23: #{tpu_custom_call.1} parent=1 // pred_check_branch
      %78 = sbr.rel (0) target = $region25
    $region24: #{tpu_custom_call.1} parent=1 // pred_region
      _
    $region25: #{tpu_custom_call.1} parent=1 // pred_fallthru
      _
    // Predicated region
    $region26: #{tpu_custom_call.1} parent=1 // pred_check
      _
    $region27: #{tpu_custom_call.1} parent=1 // pred_check_branch
      %80 = sbr.rel (0) target = $region29
    $region28: #{tpu_custom_call.1} parent=1 // pred_region
      _
    $region29: #{tpu_custom_call.1} parent=1 // pred_fallthru
      _
    %81 = vsyncpa [#allocation3], 1
    %82 = vsyncpa [#allocation5], 1

</llo_original>
